<compile_context>
chip_gen: v6e
topology: v6e:2x2x1
jax: 0.10.0
libtpu: 0.0.40
codegen_flags: <defaults>
</compile_context>

<pallas_src>
import jax
import jax.numpy as jnp
from jax.experimental import pallas as pl
from jax.experimental.pallas import tpu as pltpu


def _round_up(n, m):
    return ((n + m - 1) // m) * m


# --------------------------------------------------------------------------
# Fused multi-layer LSTM step kernel.
# Grid: (n_layers,) sequential ("arbitrary").  The [x ; h] concat buffer lives
# in VMEM scratch and carries the inter-layer activation across grid steps.
# --------------------------------------------------------------------------
def _fused_lstm_kernel(x_ref, h_ref, c_ref, w_ref, b_ref,
                       h_out_ref, c_out_ref, xh_ref):
    hid = h_ref.shape[-1]          # padded hidden dim (multiple of 128)
    d_in = x_ref.shape[-1]         # padded input-slot dim (multiple of 128)

    @pl.when(pl.program_id(0) == 0)
    def _():
        # Layer 0: the input half of the concat buffer is the embedded token.
        xh_ref[:, :d_in] = x_ref[...]

    # This layer's recurrent state goes into the second half of [x ; h].
    xh_ref[:, d_in:] = h_ref[0]

    # Single fused (B, K) @ (K, 4H) gate matmul on the MXU, f32 accumulation.
    gates = (jnp.dot(xh_ref[...], w_ref[0], preferred_element_type=jnp.float32)
             + b_ref[0].astype(jnp.float32))

    # PyTorch gate order: input, forget, cell(g), output.
    # Each slice is lane-aligned (hid is a multiple of 128 after padding).
    i_g = jax.nn.sigmoid(gates[:, 0 * hid:1 * hid])
    f_g = jax.nn.sigmoid(gates[:, 1 * hid:2 * hid])
    g_g = jnp.tanh(gates[:, 2 * hid:3 * hid])
    o_g = jax.nn.sigmoid(gates[:, 3 * hid:4 * hid])

    c_new = f_g * c_ref[0].astype(jnp.float32) + i_g * g_g
    h_new = o_g * jnp.tanh(c_new)

    c_out_ref[0] = c_new.astype(c_out_ref.dtype)
    h_out_ref[0] = h_new.astype(h_out_ref.dtype)

    # Carry this layer's h into the next layer's input slot (stays in VMEM).
    xh_ref[:, :hid] = h_new.astype(xh_ref.dtype)


# --------------------------------------------------------------------------
# Parameter construction / packing
# --------------------------------------------------------------------------
def init_decoder_params(key, embed_dim, hid_dim, n_layers, dtype=jnp.float32):
    """Raw nn.LSTM-shaped params: uniform(-k, k), k = 1/sqrt(hid_dim)."""
    k = 1.0 / float(hid_dim) ** 0.5
    params = []
    for layer in range(n_layers):
        in_dim = embed_dim if layer == 0 else hid_dim
        key, k1, k2, k3, k4 = jax.random.split(key, 5)
        params.append({
            "w_ih": jax.random.uniform(k1, (4 * hid_dim, in_dim), dtype, -k, k),
            "w_hh": jax.random.uniform(k2, (4 * hid_dim, hid_dim), dtype, -k, k),
            "b_ih": jax.random.uniform(k3, (4 * hid_dim,), dtype, -k, k),
            "b_hh": jax.random.uniform(k4, (4 * hid_dim,), dtype, -k, k),
        })
    return params


def pack_decoder_params(params, embed_dim, hid_dim):
    """Pack per-layer (W_ih, W_hh, b_ih, b_hh) into kernel layout.

    Returns:
      w_packed: (n_layers, D_in + H_pad, 4*H_pad)   rows = [x-part ; h-part]
      b_packed: (n_layers, 1, 4*H_pad)              b_ih + b_hh
    Gate columns are spread so each gate occupies a full H_pad (128-multiple)
    lane group; all padding is zeros, which keeps padded h/c columns exactly 0.
    """
    H = hid_dim
    H_pad = _round_up(H, 128)
    D_in = max(_round_up(embed_dim, 128), H_pad)
    K = D_in + H_pad

    ws, bs = [], []
    for layer, p in enumerate(params):
        in_dim = embed_dim if layer == 0 else hid_dim
        w_ih_t = p["w_ih"].T                          # (in_dim, 4H)
        w_hh_t = p["w_hh"].T                          # (H, 4H)
        bias = (p["b_ih"] + p["b_hh"]).reshape(1, 4 * H)
        w = jnp.zeros((K, 4 * H_pad), w_ih_t.dtype)
        b = jnp.zeros((1, 4 * H_pad), w_ih_t.dtype)
        for g in range(4):
            w = w.at[:in_dim, g * H_pad:g * H_pad + H].set(
                w_ih_t[:, g * H:(g + 1) * H])
            w = w.at[D_in:D_in + H, g * H_pad:g * H_pad + H].set(
                w_hh_t[:, g * H:(g + 1) * H])
            b = b.at[:, g * H_pad:g * H_pad + H].set(bias[:, g * H:(g + 1) * H])
        ws.append(w)
        bs.append(b)
    return jnp.stack(ws, 0), jnp.stack(bs, 0)


# --------------------------------------------------------------------------
# Forward wrapper
# --------------------------------------------------------------------------
@jax.jit
def decoder_forward(x, hidden, cell, w_packed, b_packed):
    """x: (B, E); hidden/cell: (L, B, H). Returns (output (B,H), hidden, cell)."""
    B, E = x.shape
    L, _, H = hidden.shape
    H_pad = w_packed.shape[-1] // 4
    K = w_packed.shape[1]
    D_in = K - H_pad
    B_pad = max(_round_up(B, 8), 8)

    # Zero-pad to lane/sublane-friendly shapes (padding columns stay exactly 0
    # through the recurrence because the corresponding weight rows/cols are 0).
    x_p = jnp.zeros((B_pad, D_in), x.dtype).at[:B, :E].set(x)
    h_p = jnp.zeros((L, B_pad, H_pad), hidden.dtype).at[:, :B, :H].set(hidden)
    c_p = jnp.zeros((L, B_pad, H_pad), cell.dtype).at[:, :B, :H].set(cell)

    h_out, c_out = pl.pallas_call(
        _fused_lstm_kernel,
        out_shape=(jax.ShapeDtypeStruct((L, B_pad, H_pad), x.dtype),
                   jax.ShapeDtypeStruct((L, B_pad, H_pad), x.dtype)),
        grid_spec=pltpu.PrefetchScalarGridSpec(
            num_scalar_prefetch=0,
            grid=(L,),
            in_specs=[
                pl.BlockSpec((B_pad, D_in), lambda l: (0, 0)),          # x
                pl.BlockSpec((1, B_pad, H_pad), lambda l: (l, 0, 0)),   # hidden
                pl.BlockSpec((1, B_pad, H_pad), lambda l: (l, 0, 0)),   # cell
                pl.BlockSpec((1, K, 4 * H_pad), lambda l: (l, 0, 0)),   # W
                pl.BlockSpec((1, 1, 4 * H_pad), lambda l: (l, 0, 0)),   # bias
            ],
            out_specs=(
                pl.BlockSpec((1, B_pad, H_pad), lambda l: (l, 0, 0)),   # h'
                pl.BlockSpec((1, B_pad, H_pad), lambda l: (l, 0, 0)),   # c'
            ),
            scratch_shapes=[pltpu.VMEM((B_pad, K), x.dtype)],           # [x ; h]
        ),
        compiler_params=pltpu.CompilerParams(
            dimension_semantics=("arbitrary",),   # layers are sequential
        ),
    )(x_p, h_p, c_p, w_packed, b_packed)

    output = h_out[L - 1, :B, :H]
    return output, h_out[:, :B, :H], c_out[:, :B, :H]


# --------------------------------------------------------------------------
# Pure-JAX reference (PyTorch semantics) for correctness checking
# --------------------------------------------------------------------------
def _decoder_forward_ref(x, hidden, cell, params):
    layer_in = x
    new_h, new_c = [], []
    H = hidden.shape[-1]
    for layer, p in enumerate(params):
        gates = (layer_in @ p["w_ih"].T + hidden[layer] @ p["w_hh"].T
                 + p["b_ih"] + p["b_hh"])
        i = jax.nn.sigmoid(gates[:, 0 * H:1 * H])
        f = jax.nn.sigmoid(gates[:, 1 * H:2 * H])
        g = jnp.tanh(gates[:, 2 * H:3 * H])
        o = jax.nn.sigmoid(gates[:, 3 * H:4 * H])
        c_l = f * cell[layer] + i * g
        h_l = o * jnp.tanh(c_l)
        new_h.append(h_l)
        new_c.append(c_l)
        layer_in = h_l
    return layer_in, jnp.stack(new_h, 0), jnp.stack(new_c, 0)


if __name__ == "__main__":
    embed_dim, hid_dim, n_layers, batch = 32, 32, 2, 4

    key = jax.random.PRNGKey(0)
    kp, kx, kh, kc = jax.random.split(key, 4)
    params = init_decoder_params(kp, embed_dim, hid_dim, n_layers)
    w_packed, b_packed = pack_decoder_params(params, embed_dim, hid_dim)

    x = jax.random.normal(kx, (batch, embed_dim), jnp.float32)
    hidden = jax.random.normal(kh, (n_layers, batch, hid_dim), jnp.float32)
    cell = jax.random.normal(kc, (n_layers, batch, hid_dim), jnp.float32)

    out, h_new, c_new = decoder_forward(x, hidden, cell, w_packed, b_packed)
    jax.block_until_ready((out, h_new, c_new))

    out_ref, h_ref, c_ref = _decoder_forward_ref(x, hidden, cell, params)
    assert out.shape == (batch, hid_dim)
    assert h_new.shape == (n_layers, batch, hid_dim)
    assert c_new.shape == (n_layers, batch, hid_dim)
    assert jnp.allclose(out, out_ref, atol=1e-4), jnp.abs(out - out_ref).max()
    assert jnp.allclose(h_new, h_ref, atol=1e-4), jnp.abs(h_new - h_ref).max()
    assert jnp.allclose(c_new, c_ref, atol=1e-4), jnp.abs(c_new - c_ref).max()

    print("KERNEL_OK")
</pallas_src>

<mosaic_0001>
module attributes {stable_mosaic.version = 11 : i64} {
  func.func @_fused_lstm_kernel(%arg0: i32, %arg1: memref<8x128xf32, #tpu.memory_space<vmem>>, %arg2: memref<1x8x128xf32, #tpu.memory_space<vmem>>, %arg3: memref<1x8x128xf32, #tpu.memory_space<vmem>>, %arg4: memref<1x256x512xf32, #tpu.memory_space<vmem>>, %arg5: memref<1x1x512xf32, #tpu.memory_space<vmem>>, %arg6: memref<1x8x128xf32, #tpu.memory_space<vmem>>, %arg7: memref<1x8x128xf32, #tpu.memory_space<vmem>>, %arg8: memref<8x256xf32, #tpu.memory_space<vmem>>) attributes {dimension_semantics = [#tpu.dimension_semantics<arbitrary>], iteration_bounds = array<i64: 2>, scalar_prefetch = 0 : i64, scratch_operands = 1 : i64, tpu.core_type = #tpu.core_type<tc>, window_params = [{pipeline_mode = #tpu.pipeline_mode<synchronous>, transform_indices = @transform_0, window_bounds = array<i64: 8, 128>}, {transform_indices = @transform_1, window_bounds = array<i64: 1, 8, 128>}, {transform_indices = @transform_2, window_bounds = array<i64: 1, 8, 128>}, {transform_indices = @transform_3, window_bounds = array<i64: 1, 256, 512>}, {transform_indices = @transform_4, window_bounds = array<i64: 1, 1, 512>}, {transform_indices = @transform_5, window_bounds = array<i64: 1, 8, 128>}, {transform_indices = @transform_6, window_bounds = array<i64: 1, 8, 128>}]} {
    %c0_i32 = arith.constant 0 : i32
    %0 = arith.cmpi eq, %arg0, %c0_i32 : i32
    %1 = arith.extui %0 : i1 to i32
    %c0_i32_0 = arith.constant 0 : i32
    %2 = arith.cmpi ne, %1, %c0_i32_0 : i32
    scf.if %2 {
      %c0_26 = arith.constant 0 : index
      %c0_27 = arith.constant 0 : index
      %48 = vector.load %arg1[%c0_26, %c0_27] : memref<8x128xf32, #tpu.memory_space<vmem>>, vector<8x128xf32>
      %c0_28 = arith.constant 0 : index
      %c0_29 = arith.constant 0 : index
      %49 = vector.load %arg8[%c0_28, %c0_29] : memref<8x256xf32, #tpu.memory_space<vmem>>, vector<8x128xf32>
      tpu.vector_store %arg8[%c0_28, %c0_29], %48 {strides = array<i32>} : memref<8x256xf32, #tpu.memory_space<vmem>>, vector<8x128xf32>,
    } else {
    }
    %c0 = arith.constant 0 : index
    %c0_1 = arith.constant 0 : index
    %c0_2 = arith.constant 0 : index
    %3 = vector.load %arg2[%c0, %c0_1, %c0_2] : memref<1x8x128xf32, #tpu.memory_space<vmem>>, vector<1x8x128xf32>
    %4 = vector.shape_cast %3 : vector<1x8x128xf32> to vector<8x128xf32>
    %c0_3 = arith.constant 0 : index
    %c128 = arith.constant 128 : index
    %5 = vector.load %arg8[%c0_3, %c128] : memref<8x256xf32, #tpu.memory_space<vmem>>, vector<8x128xf32>
    tpu.vector_store %arg8[%c0_3, %c128], %4 {strides = array<i32>} : memref<8x256xf32, #tpu.memory_space<vmem>>, vector<8x128xf32>,
    %c0_4 = arith.constant 0 : index
    %c0_5 = arith.constant 0 : index
    %6 = vector.load %arg8[%c0_4, %c0_5] : memref<8x256xf32, #tpu.memory_space<vmem>>, vector<8x256xf32>
    %c0_6 = arith.constant 0 : index
    %c0_7 = arith.constant 0 : index
    %c0_8 = arith.constant 0 : index
    %7 = vector.load %arg4[%c0_6, %c0_7, %c0_8] : memref<1x256x512xf32, #tpu.memory_space<vmem>>, vector<1x256x512xf32>
    %8 = vector.shape_cast %7 : vector<1x256x512xf32> to vector<256x512xf32>
    %cst = arith.constant dense<0.000000e+00> : vector<8x512xf32>
    %9 = tpu.matmul %6, %8, %cst {dimension_numbers = #tpu.dot_dimension_numbers<[1], [0], [0], [1], [0, 0, 1, 1], [], []>} : vector<8x256xf32>, vector<256x512xf32>, vector<8x512xf32> -> vector<8x512xf32>
    %c0_9 = arith.constant 0 : index
    %c0_10 = arith.constant 0 : index
    %c0_11 = arith.constant 0 : index
    %10 = vector.load %arg5[%c0_9, %c0_10, %c0_11] : memref<1x1x512xf32, #tpu.memory_space<vmem>>, vector<1x1x512xf32>
    %11 = vector.shape_cast %10 : vector<1x1x512xf32> to vector<1x512xf32>
    %12 = vector.broadcast %11 : vector<1x512xf32> to vector<8x512xf32>
    %13 = arith.addf %9, %12 : vector<8x512xf32>
    %14 = vector.extract_strided_slice %13 {offsets = [0, 0], sizes = [8, 128], strides = [1, 1]} : vector<8x512xf32> to vector<8x128xf32>
    %15 = arith.negf %14 : vector<8x128xf32>
    %16 = math.exp %15 : vector<8x128xf32>
    %cst_12 = arith.constant 1.000000e+00 : f32
    %17 = vector.broadcast %cst_12 : f32 to vector<8x128xf32>
    %18 = arith.addf %17, %16 : vector<8x128xf32>
    %19 = arith.divf %17, %18 : vector<8x128xf32>
    %20 = vector.extract_strided_slice %13 {offsets = [0, 128], sizes = [8, 128], strides = [1, 1]} : vector<8x512xf32> to vector<8x128xf32>
    %21 = arith.negf %20 : vector<8x128xf32>
    %22 = math.exp %21 : vector<8x128xf32>
    %cst_13 = arith.constant 1.000000e+00 : f32
    %23 = vector.broadcast %cst_13 : f32 to vector<8x128xf32>
    %24 = arith.addf %23, %22 : vector<8x128xf32>
    %25 = arith.divf %23, %24 : vector<8x128xf32>
    %26 = vector.extract_strided_slice %13 {offsets = [0, 256], sizes = [8, 128], strides = [1, 1]} : vector<8x512xf32> to vector<8x128xf32>
    %27 = math.tanh %26 : vector<8x128xf32>
    %28 = vector.extract_strided_slice %13 {offsets = [0, 384], sizes = [8, 128], strides = [1, 1]} : vector<8x512xf32> to vector<8x128xf32>
    %29 = arith.negf %28 : vector<8x128xf32>
    %30 = math.exp %29 : vector<8x128xf32>
    %cst_14 = arith.constant 1.000000e+00 : f32
    %31 = vector.broadcast %cst_14 : f32 to vector<8x128xf32>
    %32 = arith.addf %31, %30 : vector<8x128xf32>
    %33 = arith.divf %31, %32 : vector<8x128xf32>
    %c0_15 = arith.constant 0 : index
    %c0_16 = arith.constant 0 : index
    %c0_17 = arith.constant 0 : index
    %34 = vector.load %arg3[%c0_15, %c0_16, %c0_17] : memref<1x8x128xf32, #tpu.memory_space<vmem>>, vector<1x8x128xf32>
    %35 = vector.shape_cast %34 : vector<1x8x128xf32> to vector<8x128xf32>
    %36 = arith.mulf %25, %35 : vector<8x128xf32>
    %37 = arith.mulf %19, %27 : vector<8x128xf32>
    %38 = arith.addf %36, %37 : vector<8x128xf32>
    %39 = math.tanh %38 : vector<8x128xf32>
    %40 = arith.mulf %33, %39 : vector<8x128xf32>
    %c0_18 = arith.constant 0 : index
    %c0_19 = arith.constant 0 : index
    %c0_20 = arith.constant 0 : index
    %41 = vector.load %arg7[%c0_18, %c0_19, %c0_20] : memref<1x8x128xf32, #tpu.memory_space<vmem>>, vector<1x8x128xf32>
    %42 = vector.shape_cast %41 : vector<1x8x128xf32> to vector<8x128xf32>
    %43 = vector.shape_cast %38 : vector<8x128xf32> to vector<1x8x128xf32>
    tpu.vector_store %arg7[%c0_18, %c0_19, %c0_20], %43 {strides = array<i32>} : memref<1x8x128xf32, #tpu.memory_space<vmem>>, vector<1x8x128xf32>,
    %c0_21 = arith.constant 0 : index
    %c0_22 = arith.constant 0 : index
    %c0_23 = arith.constant 0 : index
    %44 = vector.load %arg6[%c0_21, %c0_22, %c0_23] : memref<1x8x128xf32, #tpu.memory_space<vmem>>, vector<1x8x128xf32>
    %45 = vector.shape_cast %44 : vector<1x8x128xf32> to vector<8x128xf32>
    %46 = vector.shape_cast %40 : vector<8x128xf32> to vector<1x8x128xf32>
    tpu.vector_store %arg6[%c0_21, %c0_22, %c0_23], %46 {strides = array<i32>} : memref<1x8x128xf32, #tpu.memory_space<vmem>>, vector<1x8x128xf32>,
    %c0_24 = arith.constant 0 : index
    %c0_25 = arith.constant 0 : index
    %47 = vector.load %arg8[%c0_24, %c0_25] : memref<8x256xf32, #tpu.memory_space<vmem>>, vector<8x128xf32>
    tpu.vector_store %arg8[%c0_24, %c0_25], %40 {strides = array<i32>} : memref<8x256xf32, #tpu.memory_space<vmem>>, vector<8x128xf32>,
    return
  }
  func.func @transform_0(%arg0: i32) -> (i32, i32) {
    %c0_i32 = arith.constant 0 : i32
    %c0_i32_0 = arith.constant 0 : i32
    %c0_i32_1 = arith.constant 0 : i32
    return %c0_i32, %c0_i32_0 : i32, i32
  }
  func.func @transform_1(%arg0: i32) -> (i32, i32, i32) {
    %c0_i32 = arith.constant 0 : i32
    %c0_i32_0 = arith.constant 0 : i32
    %c0_i32_1 = arith.constant 0 : i32
    return %arg0, %c0_i32, %c0_i32_0 : i32, i32, i32
  }
  func.func @transform_2(%arg0: i32) -> (i32, i32, i32) {
    %c0_i32 = arith.constant 0 : i32
    %c0_i32_0 = arith.constant 0 : i32
    %c0_i32_1 = arith.constant 0 : i32
    return %arg0, %c0_i32, %c0_i32_0 : i32, i32, i32
  }
  func.func @transform_3(%arg0: i32) -> (i32, i32, i32) {
    %c0_i32 = arith.constant 0 : i32
    %c0_i32_0 = arith.constant 0 : i32
    %c0_i32_1 = arith.constant 0 : i32
    return %arg0, %c0_i32, %c0_i32_0 : i32, i32, i32
  }
  func.func @transform_4(%arg0: i32) -> (i32, i32, i32) {
    %c0_i32 = arith.constant 0 : i32
    %c0_i32_0 = arith.constant 0 : i32
    %c0_i32_1 = arith.constant 0 : i32
    return %arg0, %c0_i32, %c0_i32_0 : i32, i32, i32
  }
  func.func @transform_5(%arg0: i32) -> (i32, i32, i32) {
    %c0_i32 = arith.constant 0 : i32
    %c0_i32_0 = arith.constant 0 : i32
    %c0_i32_1 = arith.constant 0 : i32
    return %arg0, %c0_i32, %c0_i32_0 : i32, i32, i32
  }
  func.func @transform_6(%arg0: i32) -> (i32, i32, i32) {
    %c0_i32 = arith.constant 0 : i32
    %c0_i32_0 = arith.constant 0 : i32
    %c0_i32_1 = arith.constant 0 : i32
    return %arg0, %c0_i32, %c0_i32_0 : i32, i32, i32
  }
}

</mosaic_0001>

<llo_original>
// kernel: decoder_forward.1
$region0: #{decoder_forward.1}
  #allocation0 [shape = 'u32[]', space=smem, size = 0x4, offset = 0x4, fixed_abs, tag = 'smem constant byte address 0x4 - core index']
  #allocation1 [shape = 'u32[144,128]{1,0:T(1,128)}', space=vmem, size = 0x12000, scoped, tag = 'internal scratch']
  #allocation2 [shape = 'f32[8,256]{1,0:T(8,128)}', space=vmem, size = 0x2000, scoped, tag = 'scratch operand']
  %s0 = inlined_call_operand.vmem [shape: f32[8,128], index: 0, kind: input, shape index: {}]
  %s1 = inlined_call_operand.vmem [shape: f32[2,8,128], index: 1, kind: input, shape index: {}]
  %s2 = inlined_call_operand.vmem [shape: f32[2,8,128], index: 2, kind: input, shape index: {}]
  %s3 = inlined_call_operand.hbm [shape: f32[2,256,512], index: 3, kind: input, shape index: {}]
  %s4 = inlined_call_operand.vmem [shape: f32[2,1,512], index: 4, kind: input, shape index: {}]
  %s5 = inlined_call_operand.vmem [shape: f32[2,8,128], index: 5, kind: output, shape index: {0}]
  %s6 = inlined_call_operand.vmem [shape: f32[2,8,128], index: 6, kind: output, shape index: {1}]
  %7 = xla_tuple %s5, %s6
  %s8 = sld [smem:[#allocation0]]
  $region69: #{decoder_forward.1} parent=0
    _
  %s10 = ssub.s32 1, %s8
  %s11 = scalar_select 0, %s10, %s8
  $region1: #{decoder_forward.1} parent=0
    #allocation3 [shape = 'u8[1048576]{0}', space=vmem, size = 0x100000, scoped, tag = 'input window, operand 3']
    #allocation4 [shape = 's32[2]{0}', space=sflag, size = 0x8, scoped, tag = 'scoped memory for decoder_forward.1']
    %12 = vsyncpa [#allocation4], 0
    %s13 = scalar_lea.sflag [#allocation4], 1
    %14 = vsyncpa %s13, 0
    loop: start=0, step=1, limit=4
    $region2: #{decoder_forward.1} parent=1 // loop_pre_header
      _
    $region3: #{decoder_forward.1} parent=1 // loop_header
      %s16 = sphi 0, %s20
      %p17 = scmp.ge.s32.totalorder %s16, 4
      %s24 = sphi 0, %s24
      %s26 = sphi 0, %s24
      %s27 = sphi 0, %s26
      %s41 = sphi 0, %s27
      %s47 = sphi 0, %s49
      %s50 = sphi 0, %s47
      %s51 = sphi 0, %s50
      %s67 = sphi 0, %s51
      %s73 = sphi 0, %s75
      %s76 = sphi 0, %s73
      %s77 = sphi 0, %s76
      %s93 = sphi 0, %s77
      %s99 = sphi 0, %s101
      %s102 = sphi 0, %s99
      %s103 = sphi 0, %s102
      %s119 = sphi 0, %s103
      %s125 = sphi 0, %s127
      %s128 = sphi 0, %s125
      %s129 = sphi 0, %s128
      %s145 = sphi 0, %s129
      %s151 = sphi 0, %s153
      %s154 = sphi 0, %s151
      %s155 = sphi 0, %s154
      %s171 = sphi 0, %s155
      %s177 = sphi 0, %s179
      %s180 = sphi 0, %s177
      %s181 = sphi 0, %s180
      %s197 = sphi 0, %s181
    $region4: #{decoder_forward.1} parent=1 // loop_header_branch
      %19 = sbr.rel (%p17) target = $region8
    $region5: #{decoder_forward.1} parent=1 // loop_body
      %s21 = ssub.s32 %s16, 1
      %s22 = ssub.s32 %s16, 2
      %s23 = sadd.s32 %s16, 1
      %s25 = sadd.s32 %s24, 1
      %p28 = scmp.eq.s32.totalorder %s16, 1
      %p29 = scmp.ne.s32.totalorder %s24, %s26
      %p30 = scmp.eq.s32.totalorder %s16, 0
      %p31 = por %p29, %p30
      %p32 = scmp.ne.s32.totalorder %s24, %s26
      %p33 = scmp.eq.s32.totalorder %s21, 1
      %p34 = por %p32, %p33
      %p35 = scmp.ne.s32.totalorder %s26, %s27
      %p36 = scmp.eq.s32.totalorder %s21, 0
      %p37 = por %p35, %p36
      %p38 = scmp.ne.s32.totalorder %s26, %s27
      %p39 = scmp.eq.s32.totalorder %s22, 1
      %p40 = por %p38, %p39
      %p42 = scmp.ne.s32.totalorder %s27, %s41
      %p43 = scmp.eq.s32.totalorder %s22, 0
      %p44 = por %p42, %p43
      %s45 = ssub.s32 %s16, %s23
      %p46 = scmp.eq.s32.totalorder %s45, 0
      %s48 = sadd.s32 %s47, 1
      %s49 = scalar_select %p46, %s47, %s48
      %p52 = pneg %p46
      %p53 = scmp.eq.s32.totalorder %s16, 1
      %p54 = por %p52, %p53
      %p55 = scmp.ne.s32.totalorder %s47, %s50
      %p56 = scmp.eq.s32.totalorder %s16, 0
      %p57 = por %p55, %p56
      %p58 = scmp.ne.s32.totalorder %s47, %s50
      %p59 = scmp.eq.s32.totalorder %s21, 1
      %p60 = por %p58, %p59
      %p61 = scmp.ne.s32.totalorder %s50, %s51
      %p62 = scmp.eq.s32.totalorder %s21, 0
      %p63 = por %p61, %p62
      %p64 = scmp.ne.s32.totalorder %s50, %s51
      %p65 = scmp.eq.s32.totalorder %s22, 1
      %p66 = por %p64, %p65
      %p68 = scmp.ne.s32.totalorder %s51, %s67
      %p69 = scmp.eq.s32.totalorder %s22, 0
      %p70 = por %p68, %p69
      %s71 = ssub.s32 %s16, %s23
      %p72 = scmp.eq.s32.totalorder %s71, 0
      %s74 = sadd.s32 %s73, 1
      %s75 = scalar_select %p72, %s73, %s74
      %p78 = pneg %p72
      %p79 = scmp.eq.s32.totalorder %s16, 1
      %p80 = por %p78, %p79
      %p81 = scmp.ne.s32.totalorder %s73, %s76
      %p82 = scmp.eq.s32.totalorder %s16, 0
      %p83 = por %p81, %p82
      %p84 = scmp.ne.s32.totalorder %s73, %s76
      %p85 = scmp.eq.s32.totalorder %s21, 1
      %p86 = por %p84, %p85
      %p87 = scmp.ne.s32.totalorder %s76, %s77
      %p88 = scmp.eq.s32.totalorder %s21, 0
      %p89 = por %p87, %p88
      %p90 = scmp.ne.s32.totalorder %s76, %s77
      %p91 = scmp.eq.s32.totalorder %s22, 1
      %p92 = por %p90, %p91
      %p94 = scmp.ne.s32.totalorder %s77, %s93
      %p95 = scmp.eq.s32.totalorder %s22, 0
      %p96 = por %p94, %p95
      %s97 = ssub.s32 %s16, %s23
      %p98 = scmp.eq.s32.totalorder %s97, 0
      %s100 = sadd.s32 %s99, 1
      %s101 = scalar_select %p98, %s99, %s100
      %p104 = pneg %p98
      %p105 = scmp.eq.s32.totalorder %s16, 1
      %p106 = por %p104, %p105
      %p107 = scmp.ne.s32.totalorder %s99, %s102
      %p108 = scmp.eq.s32.totalorder %s16, 0
      %p109 = por %p107, %p108
      %p110 = scmp.ne.s32.totalorder %s99, %s102
      %p111 = scmp.eq.s32.totalorder %s21, 1
      %p112 = por %p110, %p111
      %p113 = scmp.ne.s32.totalorder %s102, %s103
      %p114 = scmp.eq.s32.totalorder %s21, 0
      %p115 = por %p113, %p114
      %p116 = scmp.ne.s32.totalorder %s102, %s103
      %p117 = scmp.eq.s32.totalorder %s22, 1
      %p118 = por %p116, %p117
      %p120 = scmp.ne.s32.totalorder %s103, %s119
      %p121 = scmp.eq.s32.totalorder %s22, 0
      %p122 = por %p120, %p121
      %s123 = ssub.s32 %s16, %s23
      %p124 = scmp.eq.s32.totalorder %s123, 0
      %s126 = sadd.s32 %s125, 1
      %s127 = scalar_select %p124, %s125, %s126
      %p130 = pneg %p124
      %p131 = scmp.eq.s32.totalorder %s16, 1
      %p132 = por %p130, %p131
      %p133 = scmp.ne.s32.totalorder %s125, %s128
      %p134 = scmp.eq.s32.totalorder %s16, 0
      %p135 = por %p133, %p134
      %p136 = scmp.ne.s32.totalorder %s125, %s128
      %p137 = scmp.eq.s32.totalorder %s21, 1
      %p138 = por %p136, %p137
      %p139 = scmp.ne.s32.totalorder %s128, %s129
      %p140 = scmp.eq.s32.totalorder %s21, 0
      %p141 = por %p139, %p140
      %p142 = scmp.ne.s32.totalorder %s128, %s129
      %p143 = scmp.eq.s32.totalorder %s22, 1
      %p144 = por %p142, %p143
      %p146 = scmp.ne.s32.totalorder %s129, %s145
      %p147 = scmp.eq.s32.totalorder %s22, 0
      %p148 = por %p146, %p147
      %s149 = ssub.s32 %s16, %s23
      %p150 = scmp.eq.s32.totalorder %s149, 0
      %s152 = sadd.s32 %s151, 1
      %s153 = scalar_select %p150, %s151, %s152
      %p156 = pneg %p150
      %p157 = scmp.eq.s32.totalorder %s16, 1
      %p158 = por %p156, %p157
      %p159 = scmp.ne.s32.totalorder %s151, %s154
      %p160 = scmp.eq.s32.totalorder %s16, 0
      %p161 = por %p159, %p160
      %p162 = scmp.ne.s32.totalorder %s151, %s154
      %p163 = scmp.eq.s32.totalorder %s21, 1
      %p164 = por %p162, %p163
      %p165 = scmp.ne.s32.totalorder %s154, %s155
      %p166 = scmp.eq.s32.totalorder %s21, 0
      %p167 = por %p165, %p166
      %p168 = scmp.ne.s32.totalorder %s154, %s155
      %p169 = scmp.eq.s32.totalorder %s22, 1
      %p170 = por %p168, %p169
      %p172 = scmp.ne.s32.totalorder %s155, %s171
      %p173 = scmp.eq.s32.totalorder %s22, 0
      %p174 = por %p172, %p173
      %s175 = ssub.s32 %s16, %s23
      %p176 = scmp.eq.s32.totalorder %s175, 0
      %s178 = sadd.s32 %s177, 1
      %s179 = scalar_select %p176, %s177, %s178
      %p182 = pneg %p176
      %p183 = scmp.eq.s32.totalorder %s16, 1
      %p184 = por %p182, %p183
      %p185 = scmp.ne.s32.totalorder %s177, %s180
      %p186 = scmp.eq.s32.totalorder %s16, 0
      %p187 = por %p185, %p186
      %p188 = scmp.ne.s32.totalorder %s177, %s180
      %p189 = scmp.eq.s32.totalorder %s21, 1
      %p190 = por %p188, %p189
      %p191 = scmp.ne.s32.totalorder %s180, %s181
      %p192 = scmp.eq.s32.totalorder %s21, 0
      %p193 = por %p191, %p192
      %p194 = scmp.ne.s32.totalorder %s180, %s181
      %p195 = scmp.eq.s32.totalorder %s22, 1
      %p196 = por %p194, %p195
      %p198 = scmp.ne.s32.totalorder %s181, %s197
      %p199 = scmp.eq.s32.totalorder %s22, 0
      %p200 = por %p198, %p199
      %p201 = scmp.le.s32.totalorder 1, %s16
      %p202 = scmp.lt.s32.totalorder %s16, 3
      %p203 = pnand %p201, %p202
      %p204 = pneg %p203
      // Predicated region
      $region9: #{decoder_forward.1} parent=5 // pred_check
        _
      $region10: #{decoder_forward.1} parent=5 // pred_check_branch
        %206 = sbr.rel (%p203) target = $region12
      $region11: #{decoder_forward.1} parent=5 // pred_region
        %s207 = ssub.s32 %s16, 1
        // Predicated region
        $region13: #{decoder_forward.1} parent=11 // pred_check
          %p208 = pneg %p37
        $region14: #{decoder_forward.1} parent=11 // pred_check_branch
          %210 = sbr.rel (%p208) target = $region16
        $region15: #{decoder_forward.1} parent=11 // pred_region
          _
        $region16: #{decoder_forward.1} parent=11 // pred_fallthru
          _
      $region12: #{decoder_forward.1} parent=5 // pred_fallthru
        _
      %p211 = scmp.lt.s32.totalorder %s16, 2
      // Predicated region
      $region17: #{decoder_forward.1} parent=5 // pred_check
        %p212 = pneg %p211
      $region18: #{decoder_forward.1} parent=5 // pred_check_branch
        %214 = sbr.rel (%p212) target = $region20
      $region19: #{decoder_forward.1} parent=5 // pred_region
        // Predicated region
        $region21: #{decoder_forward.1} parent=19 // pred_check
          %p215 = pneg %p57
        $region22: #{decoder_forward.1} parent=19 // pred_check_branch
          %217 = sbr.rel (%p215) target = $region24
        $region23: #{decoder_forward.1} parent=19 // pred_region
          %p218 = scmp.lt.s32.totalorder %s16, 1
          %s219 = scalar_select %p218, %s16, 1
          %s220 = smul.addr %s219, 8
          %s221 = scalar_lea.vmem %s1, %s220
        $region24: #{decoder_forward.1} parent=19 // pred_fallthru
          _
        // Predicated region
        $region25: #{decoder_forward.1} parent=19 // pred_check
          %p222 = pneg %p83
        $region26: #{decoder_forward.1} parent=19 // pred_check_branch
          %224 = sbr.rel (%p222) target = $region28
        $region27: #{decoder_forward.1} parent=19 // pred_region
          %p225 = scmp.lt.s32.totalorder %s16, 1
          %s226 = scalar_select %p225, %s16, 1
          %s227 = smul.addr %s226, 8
          %s228 = scalar_lea.vmem %s2, %s227
        $region28: #{decoder_forward.1} parent=19 // pred_fallthru
          _
        // Predicated region
        $region29: #{decoder_forward.1} parent=19 // pred_check
          %p229 = pneg %p109
        $region30: #{decoder_forward.1} parent=19 // pred_check_branch
          %231 = sbr.rel (%p229) target = $region32
        $region31: #{decoder_forward.1} parent=19 // pred_region
          %s232 = sand.u32 %s99, 1
          %s233 = scalar_lea.sflag [#allocation4], %s232
          %s234 = sand.u32 %s99, 1
          %s235 = smul.addr %s234, 1024
          %s236 = scalar_lea.vmem [#allocation3], %s235
          %s238 = ssub.s32 16384, 16384
          %239 = vsyncadd %s233, %s238
          %s240 = smul.addr %s16, 128
          %s241 = smul.addr %s240, 128
          %s242 = scalar_lea.hbm %s3, %s241
          %s243 = sshll.u32 %s236, 4
          %s244 = int_to_ptr.vmem [resolvable:$true] %s243
          %249 = dma.hbm_to_vmem [thread:$0]  %s242, 16384, %s244, %s233, 512, 512, 32
        $region32: #{decoder_forward.1} parent=19 // pred_fallthru
          _
        // Predicated region
        $region33: #{decoder_forward.1} parent=19 // pred_check
          %p250 = pneg %p135
        $region34: #{decoder_forward.1} parent=19 // pred_check_branch
          %252 = sbr.rel (%p250) target = $region36
        $region35: #{decoder_forward.1} parent=19 // pred_region
          %p253 = scmp.lt.s32.totalorder %s16, 1
          %s254 = scalar_select %p253, %s16, 1
          %s255 = smul.addr %s254, 4
          %s256 = scalar_lea.vmem %s4, %s255
        $region36: #{decoder_forward.1} parent=19 // pred_fallthru
          _
      $region20: #{decoder_forward.1} parent=5 // pred_fallthru
        _
      %p257 = scmp.le.s32.totalorder 1, %s16
      %p258 = scmp.lt.s32.totalorder %s16, 3
      %p259 = pnand %p257, %p258
      %p260 = pneg %p259
      // Predicated region
      $region37: #{decoder_forward.1} parent=5 // pred_check
        _
      $region38: #{decoder_forward.1} parent=5 // pred_check_branch
        %262 = sbr.rel (%p259) target = $region40
      $region39: #{decoder_forward.1} parent=5 // pred_region
        %s263 = ssub.s32 %s16, 1
        %s264 = sand.u32 %s102, 1
        %s265 = scalar_lea.sflag [#allocation4], %s264
        %s266 = sand.u32 %s102, 1
        %s267 = smul.addr %s266, 1024
        %s268 = scalar_lea.vmem [#allocation3], %s267
        // Predicated region
        $region41: #{decoder_forward.1} parent=39 // pred_check
          %p269 = pneg %p115
        $region42: #{decoder_forward.1} parent=39 // pred_check_branch
          %271 = sbr.rel (%p269) target = $region44
        $region43: #{decoder_forward.1} parent=39 // pred_region
          %272 = dma.done %s265, 16384
        $region44: #{decoder_forward.1} parent=39 // pred_fallthru
          _
        %p273 = pneg %p37
        %p274 = pneg %p34
        %p275 = scmp.lt.s32.totalorder %s21, 1
        %s276 = scalar_select %p275, %s21, 1
        %s277 = smul.addr %s276, 8
        %s278 = scalar_lea.vmem %s1, %s277
        %p279 = pneg %p63
        %p280 = pneg %p60
        %p281 = scmp.lt.s32.totalorder %s21, 1
        %s282 = scalar_select %p281, %s21, 1
        %s283 = smul.addr %s282, 8
        %s284 = scalar_lea.vmem %s2, %s283
        %p285 = pneg %p89
        %p286 = pneg %p86
        %s287 = sand.u32 %s102, 1
        %s288 = scalar_lea.sflag [#allocation4], %s287
        %s289 = sand.u32 %s102, 1
        %s290 = smul.addr %s289, 1024
        %s291 = scalar_lea.vmem [#allocation3], %s290
        %p292 = pneg %p115
        %p293 = pneg %p112
        %p294 = scmp.lt.s32.totalorder %s21, 1
        %s295 = scalar_select %p294, %s21, 1
        %s296 = smul.addr %s295, 4
        %s297 = scalar_lea.vmem %s4, %s296
        %p298 = pneg %p141
        %p299 = pneg %p138
        %p300 = pneg %p167
        %p301 = pneg %p164
        %p302 = scmp.lt.s32.totalorder %s21, 1
        %s303 = scalar_select %p302, %s21, 1
        %s304 = smul.addr %s303, 8
        %s305 = scalar_lea.vmem %s5, %s304
        %p306 = pneg %p193
        %p307 = pneg %p190
        %p308 = scmp.lt.s32.totalorder %s21, 1
        %s309 = scalar_select %p308, %s21, 1
        %s310 = smul.addr %s309, 8
        %s311 = scalar_lea.vmem %s6, %s310
        %p312 = scmp.lt.s32.totalorder %s21, 1
        %s313 = scalar_select %p312, %s21, 1
        %s314 = smul.addr %s313, 8
        %s315 = scalar_lea.vmem %s1, %s314
        %p316 = scmp.lt.s32.totalorder %s21, 1
        %s317 = scalar_select %p316, %s21, 1
        %s318 = smul.addr %s317, 8
        %s319 = scalar_lea.vmem %s2, %s318
        %p320 = scmp.lt.s32.totalorder %s21, 1
        %s321 = scalar_select %p320, %s21, 1
        %s322 = smul.addr %s321, 4
        %s323 = scalar_lea.vmem %s4, %s322
        %p324 = scmp.lt.s32.totalorder %s21, 1
        %s325 = scalar_select %p324, %s21, 1
        %s326 = smul.addr %s325, 8
        %s327 = scalar_lea.vmem %s5, %s326
        %p328 = scmp.lt.s32.totalorder %s21, 1
        %s329 = scalar_select %p328, %s21, 1
        %s330 = smul.addr %s329, 8
        %s331 = scalar_lea.vmem %s6, %s330
        %p332 = scmp.eq.s32.totalorder %s21, 0
        // Predicated region
        $region45: #{decoder_forward.1} parent=39 // pred_check
          %p333 = pneg %p332
        $region46: #{decoder_forward.1} parent=39 // pred_check_branch
          %335 = sbr.rel (%p333) target = $region48
        $region47: #{decoder_forward.1} parent=39 // pred_region
          %v336 = vld [vmem:[%s0] sm:$0xff]
          %337 = vst [vmem:[#allocation2] sm:$0xff] %v336
        $region48: #{decoder_forward.1} parent=39 // pred_fallthru
          _
        %v338 = vld [vmem:[%s315] sm:$0xff]
        %339 = vst [vmem:[#allocation2 + $0x8] sm:$0xff] %v338
        %v340 = vld [vmem:[#allocation2] sm:$0xff]
        %v341 = vld [vmem:[#allocation2 + $0x8] sm:$0xff]
        %v342 = vld [vmem:[%s268] sm:$0xff]
        %v343 = vld [vmem:[%s268 + $0x8] sm:$0xff]
        %v344 = vld [vmem:[%s268 + $0x10] sm:$0xff]
        %v345 = vld [vmem:[%s268 + $0x18] sm:$0xff]
        %v346 = vld [vmem:[%s268 + $0x20] sm:$0xff]
        %v347 = vld [vmem:[%s268 + $0x28] sm:$0xff]
        %v348 = vld [vmem:[%s268 + $0x30] sm:$0xff]
        %v349 = vld [vmem:[%s268 + $0x38] sm:$0xff]
        %v350 = vld [vmem:[%s268 + $0x40] sm:$0xff]
        %v351 = vld [vmem:[%s268 + $0x48] sm:$0xff]
        %v352 = vld [vmem:[%s268 + $0x50] sm:$0xff]
        %v353 = vld [vmem:[%s268 + $0x58] sm:$0xff]
        %v354 = vld [vmem:[%s268 + $0x60] sm:$0xff]
        %v355 = vld [vmem:[%s268 + $0x68] sm:$0xff]
        %v356 = vld [vmem:[%s268 + $0x70] sm:$0xff]
        %v357 = vld [vmem:[%s268 + $0x78] sm:$0xff]
        %v358 = vld [vmem:[%s268 + $0x80] sm:$0xff]
        %v359 = vld [vmem:[%s268 + $0x88] sm:$0xff]
        %v360 = vld [vmem:[%s268 + $0x90] sm:$0xff]
        %v361 = vld [vmem:[%s268 + $0x98] sm:$0xff]
        %v362 = vld [vmem:[%s268 + $0xa0] sm:$0xff]
        %v363 = vld [vmem:[%s268 + $0xa8] sm:$0xff]
        %v364 = vld [vmem:[%s268 + $0xb0] sm:$0xff]
        %v365 = vld [vmem:[%s268 + $0xb8] sm:$0xff]
        %v366 = vld [vmem:[%s268 + $0xc0] sm:$0xff]
        %v367 = vld [vmem:[%s268 + $0xc8] sm:$0xff]
        %v368 = vld [vmem:[%s268 + $0xd0] sm:$0xff]
        %v369 = vld [vmem:[%s268 + $0xd8] sm:$0xff]
        %v370 = vld [vmem:[%s268 + $0xe0] sm:$0xff]
        %v371 = vld [vmem:[%s268 + $0xe8] sm:$0xff]
        %v372 = vld [vmem:[%s268 + $0xf0] sm:$0xff]
        %v373 = vld [vmem:[%s268 + $0xf8] sm:$0xff]
        %v374 = vld [vmem:[%s268 + $0x100] sm:$0xff]
        %v375 = vld [vmem:[%s268 + $0x108] sm:$0xff]
        %v376 = vld [vmem:[%s268 + $0x110] sm:$0xff]
        %v377 = vld [vmem:[%s268 + $0x118] sm:$0xff]
        %v378 = vld [vmem:[%s268 + $0x120] sm:$0xff]
        %v379 = vld [vmem:[%s268 + $0x128] sm:$0xff]
        %v380 = vld [vmem:[%s268 + $0x130] sm:$0xff]
        %v381 = vld [vmem:[%s268 + $0x138] sm:$0xff]
        %v382 = vld [vmem:[%s268 + $0x140] sm:$0xff]
        %v383 = vld [vmem:[%s268 + $0x148] sm:$0xff]
        %v384 = vld [vmem:[%s268 + $0x150] sm:$0xff]
        %v385 = vld [vmem:[%s268 + $0x158] sm:$0xff]
        %v386 = vld [vmem:[%s268 + $0x160] sm:$0xff]
        %v387 = vld [vmem:[%s268 + $0x168] sm:$0xff]
        %v388 = vld [vmem:[%s268 + $0x170] sm:$0xff]
        %v389 = vld [vmem:[%s268 + $0x178] sm:$0xff]
        %v390 = vld [vmem:[%s268 + $0x180] sm:$0xff]
        %v391 = vld [vmem:[%s268 + $0x188] sm:$0xff]
        %v392 = vld [vmem:[%s268 + $0x190] sm:$0xff]
        %v393 = vld [vmem:[%s268 + $0x198] sm:$0xff]
        %v394 = vld [vmem:[%s268 + $0x1a0] sm:$0xff]
        %v395 = vld [vmem:[%s268 + $0x1a8] sm:$0xff]
        %v396 = vld [vmem:[%s268 + $0x1b0] sm:$0xff]
        %v397 = vld [vmem:[%s268 + $0x1b8] sm:$0xff]
        %v398 = vld [vmem:[%s268 + $0x1c0] sm:$0xff]
        %v399 = vld [vmem:[%s268 + $0x1c8] sm:$0xff]
        %v400 = vld [vmem:[%s268 + $0x1d0] sm:$0xff]
        %v401 = vld [vmem:[%s268 + $0x1d8] sm:$0xff]
        %v402 = vld [vmem:[%s268 + $0x1e0] sm:$0xff]
        %v403 = vld [vmem:[%s268 + $0x1e8] sm:$0xff]
        %v404 = vld [vmem:[%s268 + $0x1f0] sm:$0xff]
        %v405 = vld [vmem:[%s268 + $0x1f8] sm:$0xff]
        %v406 = vld [vmem:[%s268 + $0x200] sm:$0xff]
        %v407 = vld [vmem:[%s268 + $0x208] sm:$0xff]
        %v408 = vld [vmem:[%s268 + $0x210] sm:$0xff]
        %v409 = vld [vmem:[%s268 + $0x218] sm:$0xff]
        %v410 = vld [vmem:[%s268 + $0x220] sm:$0xff]
        %v411 = vld [vmem:[%s268 + $0x228] sm:$0xff]
        %v412 = vld [vmem:[%s268 + $0x230] sm:$0xff]
        %v413 = vld [vmem:[%s268 + $0x238] sm:$0xff]
        %v414 = vld [vmem:[%s268 + $0x240] sm:$0xff]
        %v415 = vld [vmem:[%s268 + $0x248] sm:$0xff]
        %v416 = vld [vmem:[%s268 + $0x250] sm:$0xff]
        %v417 = vld [vmem:[%s268 + $0x258] sm:$0xff]
        %v418 = vld [vmem:[%s268 + $0x260] sm:$0xff]
        %v419 = vld [vmem:[%s268 + $0x268] sm:$0xff]
        %v420 = vld [vmem:[%s268 + $0x270] sm:$0xff]
        %v421 = vld [vmem:[%s268 + $0x278] sm:$0xff]
        %v422 = vld [vmem:[%s268 + $0x280] sm:$0xff]
        %v423 = vld [vmem:[%s268 + $0x288] sm:$0xff]
        %v424 = vld [vmem:[%s268 + $0x290] sm:$0xff]
        %v425 = vld [vmem:[%s268 + $0x298] sm:$0xff]
        %v426 = vld [vmem:[%s268 + $0x2a0] sm:$0xff]
        %v427 = vld [vmem:[%s268 + $0x2a8] sm:$0xff]
        %v428 = vld [vmem:[%s268 + $0x2b0] sm:$0xff]
        %v429 = vld [vmem:[%s268 + $0x2b8] sm:$0xff]
        %v430 = vld [vmem:[%s268 + $0x2c0] sm:$0xff]
        %v431 = vld [vmem:[%s268 + $0x2c8] sm:$0xff]
        %v432 = vld [vmem:[%s268 + $0x2d0] sm:$0xff]
        %v433 = vld [vmem:[%s268 + $0x2d8] sm:$0xff]
        %v434 = vld [vmem:[%s268 + $0x2e0] sm:$0xff]
        %v435 = vld [vmem:[%s268 + $0x2e8] sm:$0xff]
        %v436 = vld [vmem:[%s268 + $0x2f0] sm:$0xff]
        %v437 = vld [vmem:[%s268 + $0x2f8] sm:$0xff]
        %v438 = vld [vmem:[%s268 + $0x300] sm:$0xff]
        %v439 = vld [vmem:[%s268 + $0x308] sm:$0xff]
        %v440 = vld [vmem:[%s268 + $0x310] sm:$0xff]
        %v441 = vld [vmem:[%s268 + $0x318] sm:$0xff]
        %v442 = vld [vmem:[%s268 + $0x320] sm:$0xff]
        %v443 = vld [vmem:[%s268 + $0x328] sm:$0xff]
        %v444 = vld [vmem:[%s268 + $0x330] sm:$0xff]
        %v445 = vld [vmem:[%s268 + $0x338] sm:$0xff]
        %v446 = vld [vmem:[%s268 + $0x340] sm:$0xff]
        %v447 = vld [vmem:[%s268 + $0x348] sm:$0xff]
        %v448 = vld [vmem:[%s268 + $0x350] sm:$0xff]
        %v449 = vld [vmem:[%s268 + $0x358] sm:$0xff]
        %v450 = vld [vmem:[%s268 + $0x360] sm:$0xff]
        %v451 = vld [vmem:[%s268 + $0x368] sm:$0xff]
        %v452 = vld [vmem:[%s268 + $0x370] sm:$0xff]
        %v453 = vld [vmem:[%s268 + $0x378] sm:$0xff]
        %v454 = vld [vmem:[%s268 + $0x380] sm:$0xff]
        %v455 = vld [vmem:[%s268 + $0x388] sm:$0xff]
        %v456 = vld [vmem:[%s268 + $0x390] sm:$0xff]
        %v457 = vld [vmem:[%s268 + $0x398] sm:$0xff]
        %v458 = vld [vmem:[%s268 + $0x3a0] sm:$0xff]
        %v459 = vld [vmem:[%s268 + $0x3a8] sm:$0xff]
        %v460 = vld [vmem:[%s268 + $0x3b0] sm:$0xff]
        %v461 = vld [vmem:[%s268 + $0x3b8] sm:$0xff]
        %v462 = vld [vmem:[%s268 + $0x3c0] sm:$0xff]
        %v463 = vld [vmem:[%s268 + $0x3c8] sm:$0xff]
        %v464 = vld [vmem:[%s268 + $0x3d0] sm:$0xff]
        %v465 = vld [vmem:[%s268 + $0x3d8] sm:$0xff]
        %v466 = vld [vmem:[%s268 + $0x3e0] sm:$0xff]
        %v467 = vld [vmem:[%s268 + $0x3e8] sm:$0xff]
        %v468 = vld [vmem:[%s268 + $0x3f0] sm:$0xff]
        %v469 = vld [vmem:[%s268 + $0x3f8] sm:$0xff]
        %v470 = vld [vmem:[%s323] sm:$0xf]
        %v472 = vlaneseq
        %v473 = vshrl.u32 %v472, 7
        %v474 = vsub.s32 0, %v473
        %v475 = vrot.slane %v470, %v474
        %v476 = vlaneseq
        %v477 = vshrl.u32 %v476, 7
        %v478 = vsub.s32 1, %v477
        %v479 = vrot.slane %v470, %v478
        %v480 = vlaneseq
        %v481 = vshrl.u32 %v480, 7
        %v482 = vsub.s32 2, %v481
        %v483 = vrot.slane %v470, %v482
        %v484 = vlaneseq
        %v485 = vshrl.u32 %v484, 7
        %v486 = vsub.s32 3, %v485
        %v487 = vrot.slane %v470, %v486
        %492 = vmatprep.subr.mxu0 %v403
        %493 = vmatpush1.msra.mxu0 %v402
        %494 = vmatprep.subr.mxu0 %v399
        %495 = vmatpush1.msra.mxu0 %v398
        %496 = vmatprep.subr.mxu0 %v395
        %497 = vmatpush1.msra.mxu0 %v394
        %498 = vmatprep.subr.mxu0 %v391
        %499 = vmatpush1.msra.mxu0 %v390
        %500 = vmatprep.subr.mxu0 %v387
        %501 = vmatpush1.msra.mxu0 %v386
        %502 = vmatprep.subr.mxu0 %v383
        %503 = vmatpush1.msra.mxu0 %v382
        %504 = vmatprep.subr.mxu0 %v379
        %505 = vmatpush1.msra.mxu0 %v378
        %506 = vmatprep.subr.mxu0 %v375
        %507 = vmatpush1.msra.mxu0 %v374
        %508 = vmatprep.subr.mxu0 %v371
        %509 = vmatpush1.msra.mxu0 %v370
        %510 = vmatprep.subr.mxu0 %v367
        %511 = vmatpush1.msra.mxu0 %v366
        %512 = vmatprep.subr.mxu0 %v363
        %513 = vmatpush1.msra.mxu0 %v362
        %514 = vmatprep.subr.mxu0 %v359
        %515 = vmatpush1.msra.mxu0 %v358
        %516 = vmatprep.subr.mxu0 %v355
        %517 = vmatpush1.msra.mxu0 %v354
        %518 = vmatprep.subr.mxu0 %v351
        %519 = vmatpush1.msra.mxu0 %v350
        %520 = vmatprep.subr.mxu0 %v347
        %521 = vmatpush1.msra.mxu0 %v346
        %522 = vmatprep.subr.mxu0 %v343
        %523 = vmatpush1.msra.mxu0 %v342
        %524 = vmatprep.subr.mxu0 %v467
        %525 = vmatpush2.msra.mxu0 %v466
        %526 = vmatprep.subr.mxu0 %v463
        %527 = vmatpush2.msra.mxu0 %v462
        %528 = vmatprep.subr.mxu0 %v459
        %529 = vmatpush2.msra.mxu0 %v458
        %530 = vmatprep.subr.mxu0 %v455
        %531 = vmatpush2.msra.mxu0 %v454
        %532 = vmatprep.subr.mxu0 %v451
        %533 = vmatpush2.msra.mxu0 %v450
        %534 = vmatprep.subr.mxu0 %v447
        %535 = vmatpush2.msra.mxu0 %v446
        %536 = vmatprep.subr.mxu0 %v443
        %537 = vmatpush2.msra.mxu0 %v442
        %538 = vmatprep.subr.mxu0 %v439
        %539 = vmatpush2.msra.mxu0 %v438
        %540 = vmatprep.subr.mxu0 %v435
        %541 = vmatpush2.msra.mxu0 %v434
        %542 = vmatprep.subr.mxu0 %v431
        %543 = vmatpush2.msra.mxu0 %v430
        %544 = vmatprep.subr.mxu0 %v427
        %545 = vmatpush2.msra.mxu0 %v426
        %546 = vmatprep.subr.mxu0 %v423
        %547 = vmatpush2.msra.mxu0 %v422
        %548 = vmatprep.subr.mxu0 %v419
        %549 = vmatpush2.msra.mxu0 %v418
        %550 = vmatprep.subr.mxu0 %v415
        %551 = vmatpush2.msra.mxu0 %v414
        %552 = vmatprep.subr.mxu0 %v411
        %553 = vmatpush2.msra.mxu0 %v410
        %554 = vmatprep.subr.mxu0 %v407
        %555 = vmatpush2.msra.mxu0 %v406
        %556 = vmatprep.mubr.f32.mxu0 %v341
        %557 = vmatmul.mubr.f32.gmra.mxu0 %v340
        %v558 = vpop.f32.mrf.mxu0
        %v559 = vadd.f32 %v475, %v558
        %v560 = vpop.f32.mrf.mxu0
        %v561 = vadd.f32 %v479, %v560
        %562 = vdwg.mxu0
        %563 = vmatprep.subr.mxu0 %v405
        %564 = vmatpush1.msra.mxu0 %v404
        %565 = vmatprep.subr.mxu0 %v401
        %566 = vmatpush1.msra.mxu0 %v400
        %567 = vmatprep.subr.mxu0 %v397
        %568 = vmatpush1.msra.mxu0 %v396
        %569 = vmatprep.subr.mxu0 %v393
        %570 = vmatpush1.msra.mxu0 %v392
        %571 = vmatprep.subr.mxu0 %v389
        %572 = vmatpush1.msra.mxu0 %v388
        %573 = vmatprep.subr.mxu0 %v385
        %574 = vmatpush1.msra.mxu0 %v384
        %575 = vmatprep.subr.mxu0 %v381
        %576 = vmatpush1.msra.mxu0 %v380
        %577 = vmatprep.subr.mxu0 %v377
        %578 = vmatpush1.msra.mxu0 %v376
        %579 = vmatprep.subr.mxu0 %v373
        %580 = vmatpush1.msra.mxu0 %v372
        %581 = vmatprep.subr.mxu0 %v369
        %582 = vmatpush1.msra.mxu0 %v368
        %583 = vmatprep.subr.mxu0 %v365
        %584 = vmatpush1.msra.mxu0 %v364
        %585 = vmatprep.subr.mxu0 %v361
        %586 = vmatpush1.msra.mxu0 %v360
        %587 = vmatprep.subr.mxu0 %v357
        %588 = vmatpush1.msra.mxu0 %v356
        %589 = vmatprep.subr.mxu0 %v353
        %590 = vmatpush1.msra.mxu0 %v352
        %591 = vmatprep.subr.mxu0 %v349
        %592 = vmatpush1.msra.mxu0 %v348
        %593 = vmatprep.subr.mxu0 %v345
        %594 = vmatpush1.msra.mxu0 %v344
        %595 = vmatprep.subr.mxu0 %v469
        %596 = vmatpush2.msra.mxu0 %v468
        %597 = vmatprep.subr.mxu0 %v465
        %598 = vmatpush2.msra.mxu0 %v464
        %599 = vmatprep.subr.mxu0 %v461
        %600 = vmatpush2.msra.mxu0 %v460
        %601 = vmatprep.subr.mxu0 %v457
        %602 = vmatpush2.msra.mxu0 %v456
        %603 = vmatprep.subr.mxu0 %v453
        %604 = vmatpush2.msra.mxu0 %v452
        %605 = vmatprep.subr.mxu0 %v449
        %606 = vmatpush2.msra.mxu0 %v448
        %607 = vmatprep.subr.mxu0 %v445
        %608 = vmatpush2.msra.mxu0 %v444
        %609 = vmatprep.subr.mxu0 %v441
        %610 = vmatpush2.msra.mxu0 %v440
        %611 = vmatprep.subr.mxu0 %v437
        %612 = vmatpush2.msra.mxu0 %v436
        %613 = vmatprep.subr.mxu0 %v433
        %614 = vmatpush2.msra.mxu0 %v432
        %615 = vmatprep.subr.mxu0 %v429
        %616 = vmatpush2.msra.mxu0 %v428
        %617 = vmatprep.subr.mxu0 %v425
        %618 = vmatpush2.msra.mxu0 %v424
        %619 = vmatprep.subr.mxu0 %v421
        %620 = vmatpush2.msra.mxu0 %v420
        %621 = vmatprep.subr.mxu0 %v417
        %622 = vmatpush2.msra.mxu0 %v416
        %623 = vmatprep.subr.mxu0 %v413
        %624 = vmatpush2.msra.mxu0 %v412
        %625 = vmatprep.subr.mxu0 %v409
        %626 = vmatpush2.msra.mxu0 %v408
        %627 = vmatprep.mubr.f32.mxu0 %v341
        %628 = vmatmul.mubr.f32.gmra.mxu0 %v340
        %v629 = vpop.f32.mrf.mxu0
        %v630 = vadd.f32 %v483, %v629
        %v631 = vpop.f32.mrf.mxu0
        %v632 = vadd.f32 %v487, %v631
        %633 = vdwg.mxu0
        %v634 = vxor.u32 %v559, 2147483648
        %v635 = vmul.f32 %v634, 1.442695
        %v636 = vpow.pop %v635
        %v637 = vadd.f32 %v636, 1.0
        %v638 = vrcp.pop %v637
        %v639 = vmul.f32 1.0, %v638
        %v640 = vxor.u32 %v561, 2147483648
        %v641 = vmul.f32 %v640, 1.442695
        %v642 = vpow.pop %v641
        %v643 = vadd.f32 %v642, 1.0
        %v644 = vrcp.pop %v643
        %v645 = vmul.f32 1.0, %v644
        %v646 = vtanh.pop %v630
        %v647 = vxor.u32 %v632, 2147483648
        %v648 = vmul.f32 %v647, 1.442695
        %v649 = vpow.pop %v648
        %v650 = vadd.f32 %v649, 1.0
        %v651 = vrcp.pop %v650
        %v652 = vmul.f32 1.0, %v651
        %v653 = vld [vmem:[%s319] sm:$0xff]
        %v654 = vmul.f32 %v645, %v653
        %v655 = vmul.f32 %v639, %v646
        %v656 = vadd.f32 %v654, %v655
        %v657 = vtanh.pop %v656
        %v658 = vmul.f32 %v652, %v657
        %659 = vst [vmem:[%s331] sm:$0xff] %v656
        %660 = vst [vmem:[%s327] sm:$0xff] %v658
        %661 = vst [vmem:[#allocation2] sm:$0xff] %v658
        %p662 = scmp.lt.s32.totalorder %s21, 1
        %s663 = scalar_select %p662, %s21, 1
        %s664 = smul.addr %s663, 8
        %s665 = scalar_lea.vmem %s5, %s664
        %p666 = scmp.lt.s32.totalorder %s21, 1
        %s667 = scalar_select %p666, %s21, 1
        %s668 = smul.addr %s667, 8
        %s669 = scalar_lea.vmem %s6, %s668
        // Predicated region
        $region49: #{decoder_forward.1} parent=39 // pred_check
          %p670 = pneg %p164
        $region50: #{decoder_forward.1} parent=39 // pred_check_branch
          %672 = sbr.rel (%p670) target = $region52
        $region51: #{decoder_forward.1} parent=39 // pred_region
          _
        $region52: #{decoder_forward.1} parent=39 // pred_fallthru
          _
        // Predicated region
        $region53: #{decoder_forward.1} parent=39 // pred_check
          %p673 = pneg %p190
        $region54: #{decoder_forward.1} parent=39 // pred_check_branch
          %675 = sbr.rel (%p673) target = $region56
        $region55: #{decoder_forward.1} parent=39 // pred_region
          _
        $region56: #{decoder_forward.1} parent=39 // pred_fallthru
          _
      $region40: #{decoder_forward.1} parent=5 // pred_fallthru
        _
      %p676 = scmp.le.s32.totalorder 2, %s16
      // Predicated region
      $region57: #{decoder_forward.1} parent=5 // pred_check
        %p677 = pneg %p676
      $region58: #{decoder_forward.1} parent=5 // pred_check_branch
        %679 = sbr.rel (%p677) target = $region60
      $region59: #{decoder_forward.1} parent=5 // pred_region
        %s680 = ssub.s32 %s16, 2
        // Predicated region
        $region61: #{decoder_forward.1} parent=59 // pred_check
          %p681 = pneg %p170
        $region62: #{decoder_forward.1} parent=59 // pred_check_branch
          %683 = sbr.rel (%p681) target = $region64
        $region63: #{decoder_forward.1} parent=59 // pred_region
          %p684 = scmp.lt.s32.totalorder %s22, 1
          %s685 = scalar_select %p684, %s22, 1
          %s686 = smul.addr %s685, 8
          %s687 = scalar_lea.vmem %s5, %s686
        $region64: #{decoder_forward.1} parent=59 // pred_fallthru
          _
        // Predicated region
        $region65: #{decoder_forward.1} parent=59 // pred_check
          %p688 = pneg %p196
        $region66: #{decoder_forward.1} parent=59 // pred_check_branch
          %690 = sbr.rel (%p688) target = $region68
        $region67: #{decoder_forward.1} parent=59 // pred_region
          %p691 = scmp.lt.s32.totalorder %s22, 1
          %s692 = scalar_select %p691, %s22, 1
          %s693 = smul.addr %s692, 8
          %s694 = scalar_lea.vmem %s6, %s693
        $region68: #{decoder_forward.1} parent=59 // pred_fallthru
          _
      $region60: #{decoder_forward.1} parent=5 // pred_fallthru
        _
    $region6: #{decoder_forward.1} parent=1 // loop_footer
      %s20 = sadd.s32 1, %s16
    $region7: #{decoder_forward.1} parent=1 // loop_footer_branch
      %15 = sbr.rel target = $region3
    $region8: #{decoder_forward.1} parent=1 // loop_exit
      _
    %695 = vsyncpa [#allocation4], 1
    %s696 = scalar_lea.sflag [#allocation4], 1
    %697 = vsyncpa %s696, 1

</llo_original>
